<compile_context>
chip_gen: v5e
topology: v5e:2x2
jax: 0.10.0
libtpu: 0.0.40
codegen_flags: <defaults>
</compile_context>

<pallas_src>
import functools
import math

import jax
import jax.numpy as jnp
from jax.experimental import pallas as pl
from jax.experimental.pallas import tpu as pltpu


KSIZE = 5
STRIDE = 1
PAD = 4


def _gaussian_taps_1d(kernel_size: int = KSIZE) -> tuple:
    """1-D Gaussian taps as Python floats. Their outer product reproduces the
    normalized 2-D kernel built in the PyTorch __init__ exactly."""
    mean = (kernel_size - 1) / 2.0
    variance = (kernel_size / 6.0) ** 2.0
    u = [math.exp(-((k - mean) ** 2) / (2.0 * variance)) for k in range(kernel_size)]
    s = sum(u)
    return tuple(v / s for v in u)


def _make_gaussian_weight_2d(kernel_size: int, channels: int) -> jnp.ndarray:
    """Same construction as the PyTorch __init__ (used only by the reference)."""
    mean = (kernel_size - 1) / 2.0
    variance = (kernel_size / 6.0) ** 2.0
    coord = jnp.arange(kernel_size, dtype=jnp.float32)
    x_grid = jnp.tile(coord, (kernel_size,)).reshape(kernel_size, kernel_size)
    y_grid = x_grid.T
    xy_grid = jnp.stack([x_grid, y_grid], axis=-1)
    g = jnp.exp(-jnp.sum((xy_grid - mean) ** 2.0, axis=-1) / (2.0 * variance))
    g = g / jnp.sum(g)
    return jnp.tile(g[None, :, :], (channels, 1, 1))


def _gauss_kernel(x_ref, o_ref, pad_ref, *, taps):
    # x_ref  : (1, C, H, W)        unpadded input block (one batch element)
    # o_ref  : (1, C, H_out, W_out) output block
    # pad_ref: (C, H_pad, W_pad)   f32 VMEM scratch used for in-kernel zero pad
    h = x_ref.shape[2]
    w = x_ref.shape[3]
    h_out = o_ref.shape[2]
    w_out = o_ref.shape[3]

    # In-kernel zero padding: memset the scratch tile, store the interior.
    pad_ref[...] = jnp.zeros_like(pad_ref)
    pad_ref[:, PAD:PAD + h, PAD:PAD + w] = x_ref[0].astype(jnp.float32)
    xp = pad_ref[...]                                   # (C, H_pad, W_pad)

    # Separable pass 1: 5-tap vertical (sublane-direction shifts).
    v = taps[0] * xp[:, 0:h_out, :]
    for kh in range(1, KSIZE):
        v = v + taps[kh] * xp[:, kh:kh + h_out, :]      # (C, H_out, W_pad)

    # Separable pass 2: 5-tap horizontal (lane-direction shifts).
    out = taps[0] * v[:, :, 0:w_out]
    for kw in range(1, KSIZE):
        out = out + taps[kw] * v[:, :, kw:kw + w_out]   # (C, H_out, W_out)

    o_ref[0] = out.astype(o_ref.dtype)


def gaussian_filter(x: jnp.ndarray) -> jnp.ndarray:
    """x: (N, C, H, W) float32. Depthwise 5x5 Gaussian blur, stride=1,
    padding=PAD (so H_out = H + 2*PAD - KSIZE + 1)."""
    n, c, h, w = x.shape
    h_pad = h + 2 * PAD
    w_pad = w + 2 * PAD
    h_out = h_pad - KSIZE + 1
    w_out = w_pad - KSIZE + 1

    kernel = functools.partial(_gauss_kernel, taps=_gaussian_taps_1d(KSIZE))

    return pl.pallas_call(
        kernel,
        out_shape=jax.ShapeDtypeStruct((n, c, h_out, w_out), x.dtype),
        grid_spec=pltpu.PrefetchScalarGridSpec(
            num_scalar_prefetch=0,
            grid=(n,),
            in_specs=[
                pl.BlockSpec((1, c, h, w), lambda i: (i, 0, 0, 0)),
            ],
            out_specs=pl.BlockSpec((1, c, h_out, w_out), lambda i: (i, 0, 0, 0)),
            scratch_shapes=[pltpu.VMEM((c, h_pad, w_pad), jnp.float32)],
        ),
        compiler_params=pltpu.CompilerParams(
            dimension_semantics=("parallel",),
        ),
    )(x)


def _reference(x: jnp.ndarray, weight: jnp.ndarray) -> jnp.ndarray:
    """Pure-JAX depthwise conv reference (matches F.conv2d groups=C)."""
    c = x.shape[1]
    wt = weight[:, None, :, :]  # (C, 1, kH, kW) = OIHW with feature_group_count=C
    return jax.lax.conv_general_dilated(
        x, wt,
        window_strides=(STRIDE, STRIDE),
        padding=((PAD, PAD), (PAD, PAD)),
        dimension_numbers=("NCHW", "OIHW", "NCHW"),
        feature_group_count=c,
    )


if __name__ == "__main__":
    key = jax.random.PRNGKey(0)
    N, C, H, W = 2, 3, 16, 16
    x = jax.random.normal(key, (N, C, H, W), dtype=jnp.float32)

    out = jax.block_until_ready(gaussian_filter(x))

    ref = jax.block_until_ready(_reference(x, _make_gaussian_weight_2d(KSIZE, C)))
    assert out.shape == (N, C, H + 2 * PAD - KSIZE + 1, W + 2 * PAD - KSIZE + 1)
    assert jnp.allclose(out, ref, atol=1e-5, rtol=1e-5)

    print("KERNEL_OK")
</pallas_src>

<mosaic_0001>
module attributes {stable_mosaic.version = 11 : i64} {
  func.func @_gauss_kernel(%arg0: i32, %arg1: memref<1x3x16x16xf32, #tpu.memory_space<vmem>>, %arg2: memref<1x3x20x20xf32, #tpu.memory_space<vmem>>, %arg3: memref<3x24x24xf32, #tpu.memory_space<vmem>>) attributes {dimension_semantics = [#tpu.dimension_semantics<parallel>], iteration_bounds = array<i64: 2>, scalar_prefetch = 0 : i64, scratch_operands = 1 : i64, tpu.core_type = #tpu.core_type<tc>, window_params = [{transform_indices = @transform_0, window_bounds = array<i64: 1, 3, 16, 16>}, {transform_indices = @transform_1, window_bounds = array<i64: 1, 3, 20, 20>}]} {
    %cst = arith.constant 0.000000e+00 : f32
    %0 = vector.broadcast %cst : f32 to vector<3x24x24xf32>
    %c0 = arith.constant 0 : index
    %c0_0 = arith.constant 0 : index
    %c0_1 = arith.constant 0 : index
    %1 = vector.load %arg3[%c0, %c0_0, %c0_1] : memref<3x24x24xf32, #tpu.memory_space<vmem>>, vector<3x24x24xf32>
    tpu.vector_store %arg3[%c0, %c0_0, %c0_1], %0 {strides = array<i32>} : memref<3x24x24xf32, #tpu.memory_space<vmem>>, vector<3x24x24xf32>,
    %c0_2 = arith.constant 0 : index
    %c0_3 = arith.constant 0 : index
    %c0_4 = arith.constant 0 : index
    %c0_5 = arith.constant 0 : index
    %2 = vector.load %arg1[%c0_2, %c0_3, %c0_4, %c0_5] : memref<1x3x16x16xf32, #tpu.memory_space<vmem>>, vector<1x3x16x16xf32>
    %3 = vector.shape_cast %2 : vector<1x3x16x16xf32> to vector<3x16x16xf32>
    %c0_6 = arith.constant 0 : index
    %c4 = arith.constant 4 : index
    %c4_7 = arith.constant 4 : index
    %4 = vector.load %arg3[%c0_6, %c4, %c4_7] : memref<3x24x24xf32, #tpu.memory_space<vmem>>, vector<3x16x16xf32>
    tpu.vector_store %arg3[%c0_6, %c4, %c4_7], %3 {strides = array<i32>} : memref<3x24x24xf32, #tpu.memory_space<vmem>>, vector<3x16x16xf32>,
    %c0_8 = arith.constant 0 : index
    %c0_9 = arith.constant 0 : index
    %c0_10 = arith.constant 0 : index
    %5 = vector.load %arg3[%c0_8, %c0_9, %c0_10] : memref<3x24x24xf32, #tpu.memory_space<vmem>>, vector<3x24x24xf32>
    %6 = vector.extract_strided_slice %5 {offsets = [0, 0, 0], sizes = [3, 20, 24], strides = [1, 1, 1]} : vector<3x24x24xf32> to vector<3x20x24xf32>
    %cst_11 = arith.constant 0.0269131567 : f32
    %7 = vector.broadcast %cst_11 : f32 to vector<3x20x24xf32>
    %8 = arith.mulf %7, %6 : vector<3x20x24xf32>
    %9 = vector.extract_strided_slice %5 {offsets = [0, 1, 0], sizes = [3, 20, 24], strides = [1, 1, 1]} : vector<3x24x24xf32> to vector<3x20x24xf32>
    %cst_12 = arith.constant 0.233367682 : f32
    %10 = vector.broadcast %cst_12 : f32 to vector<3x20x24xf32>
    %11 = arith.mulf %10, %9 : vector<3x20x24xf32>
    %12 = arith.addf %8, %11 : vector<3x20x24xf32>
    %13 = vector.extract_strided_slice %5 {offsets = [0, 2, 0], sizes = [3, 20, 24], strides = [1, 1, 1]} : vector<3x24x24xf32> to vector<3x20x24xf32>
    %cst_13 = arith.constant 0.479438305 : f32
    %14 = vector.broadcast %cst_13 : f32 to vector<3x20x24xf32>
    %15 = arith.mulf %14, %13 : vector<3x20x24xf32>
    %16 = arith.addf %12, %15 : vector<3x20x24xf32>
    %17 = vector.extract_strided_slice %5 {offsets = [0, 3, 0], sizes = [3, 20, 24], strides = [1, 1, 1]} : vector<3x24x24xf32> to vector<3x20x24xf32>
    %cst_14 = arith.constant 0.233367682 : f32
    %18 = vector.broadcast %cst_14 : f32 to vector<3x20x24xf32>
    %19 = arith.mulf %18, %17 : vector<3x20x24xf32>
    %20 = arith.addf %16, %19 : vector<3x20x24xf32>
    %21 = vector.extract_strided_slice %5 {offsets = [0, 4, 0], sizes = [3, 20, 24], strides = [1, 1, 1]} : vector<3x24x24xf32> to vector<3x20x24xf32>
    %cst_15 = arith.constant 0.0269131567 : f32
    %22 = vector.broadcast %cst_15 : f32 to vector<3x20x24xf32>
    %23 = arith.mulf %22, %21 : vector<3x20x24xf32>
    %24 = arith.addf %20, %23 : vector<3x20x24xf32>
    %25 = vector.extract_strided_slice %24 {offsets = [0, 0, 0], sizes = [3, 20, 20], strides = [1, 1, 1]} : vector<3x20x24xf32> to vector<3x20x20xf32>
    %cst_16 = arith.constant 0.0269131567 : f32
    %26 = vector.broadcast %cst_16 : f32 to vector<3x20x20xf32>
    %27 = arith.mulf %26, %25 : vector<3x20x20xf32>
    %28 = vector.extract_strided_slice %24 {offsets = [0, 0, 1], sizes = [3, 20, 20], strides = [1, 1, 1]} : vector<3x20x24xf32> to vector<3x20x20xf32>
    %cst_17 = arith.constant 0.233367682 : f32
    %29 = vector.broadcast %cst_17 : f32 to vector<3x20x20xf32>
    %30 = arith.mulf %29, %28 : vector<3x20x20xf32>
    %31 = arith.addf %27, %30 : vector<3x20x20xf32>
    %32 = vector.extract_strided_slice %24 {offsets = [0, 0, 2], sizes = [3, 20, 20], strides = [1, 1, 1]} : vector<3x20x24xf32> to vector<3x20x20xf32>
    %cst_18 = arith.constant 0.479438305 : f32
    %33 = vector.broadcast %cst_18 : f32 to vector<3x20x20xf32>
    %34 = arith.mulf %33, %32 : vector<3x20x20xf32>
    %35 = arith.addf %31, %34 : vector<3x20x20xf32>
    %36 = vector.extract_strided_slice %24 {offsets = [0, 0, 3], sizes = [3, 20, 20], strides = [1, 1, 1]} : vector<3x20x24xf32> to vector<3x20x20xf32>
    %cst_19 = arith.constant 0.233367682 : f32
    %37 = vector.broadcast %cst_19 : f32 to vector<3x20x20xf32>
    %38 = arith.mulf %37, %36 : vector<3x20x20xf32>
    %39 = arith.addf %35, %38 : vector<3x20x20xf32>
    %40 = vector.extract_strided_slice %24 {offsets = [0, 0, 4], sizes = [3, 20, 20], strides = [1, 1, 1]} : vector<3x20x24xf32> to vector<3x20x20xf32>
    %cst_20 = arith.constant 0.0269131567 : f32
    %41 = vector.broadcast %cst_20 : f32 to vector<3x20x20xf32>
    %42 = arith.mulf %41, %40 : vector<3x20x20xf32>
    %43 = arith.addf %39, %42 : vector<3x20x20xf32>
    %c0_21 = arith.constant 0 : index
    %c0_22 = arith.constant 0 : index
    %c0_23 = arith.constant 0 : index
    %c0_24 = arith.constant 0 : index
    %44 = vector.load %arg2[%c0_21, %c0_22, %c0_23, %c0_24] : memref<1x3x20x20xf32, #tpu.memory_space<vmem>>, vector<1x3x20x20xf32>
    %45 = vector.shape_cast %44 : vector<1x3x20x20xf32> to vector<3x20x20xf32>
    %46 = vector.shape_cast %43 : vector<3x20x20xf32> to vector<1x3x20x20xf32>
    tpu.vector_store %arg2[%c0_21, %c0_22, %c0_23, %c0_24], %46 {strides = array<i32>} : memref<1x3x20x20xf32, #tpu.memory_space<vmem>>, vector<1x3x20x20xf32>,
    return
  }
  func.func @transform_0(%arg0: i32) -> (i32, i32, i32, i32) {
    %c0_i32 = arith.constant 0 : i32
    %c0_i32_0 = arith.constant 0 : i32
    %c0_i32_1 = arith.constant 0 : i32
    %c0_i32_2 = arith.constant 0 : i32
    return %arg0, %c0_i32, %c0_i32_0, %c0_i32_1 : i32, i32, i32, i32
  }
  func.func @transform_1(%arg0: i32) -> (i32, i32, i32, i32) {
    %c0_i32 = arith.constant 0 : i32
    %c0_i32_0 = arith.constant 0 : i32
    %c0_i32_1 = arith.constant 0 : i32
    %c0_i32_2 = arith.constant 0 : i32
    return %arg0, %c0_i32, %c0_i32_0, %c0_i32_1 : i32, i32, i32, i32
  }
}

</mosaic_0001>

<llo_original>
// kernel: tpu_custom_call.1
$region0: #{tpu_custom_call.1}
  #allocation0 [shape = 'u32[]', space=smem, size = 0x4, offset = 0x4, fixed_abs, tag = 'smem constant byte address 0x4 - core index']
  #allocation1 [shape = 'u32[72,128]{1,0:T(1,128)}', space=vmem, size = 0x9000, scoped, tag = 'internal scratch']
  #allocation2 [shape = 'f32[3,24,24]{2,1,0:T(8,128)}', space=vmem, size = 0x9000, scoped, tag = 'scratch operand']
  %s0 = inlined_call_operand.hbm [shape: f32[2,3,16,16], index: 0, kind: input, shape index: {}]
  %s1 = inlined_call_operand.vmem [shape: f32[2,3,20,20], index: 1, kind: output, shape index: {}]
  %s2 = sld [smem:[#allocation0]]
  $region41: #{tpu_custom_call.1} parent=0
    _
  %s4 = ssub.s32 1, %s2
  %s5 = scalar_select 0, %s4, %s2
  $region1: #{tpu_custom_call.1} parent=0
    #allocation3 [shape = 'u8[49152]{0}', space=vmem, size = 0xc000, scoped, tag = 'input window, operand 0']
    #allocation4 [shape = 's32[2]{0}', space=sflag, size = 0x8, scoped, tag = 'scoped memory for tpu_custom_call.1']
    %6 = vsyncpa [#allocation4], 0
    %s7 = scalar_lea.sflag [#allocation4], 1
    %8 = vsyncpa %s7, 0
    loop: start=0, step=1, limit=4
    $region2: #{tpu_custom_call.1} parent=1 // loop_pre_header
      _
    $region3: #{tpu_custom_call.1} parent=1 // loop_header
      %s10 = sphi 0, %s14
      %p11 = scmp.ge.s32.totalorder %s10, 4
      %s20 = sphi 0, %s22
      %s23 = sphi 0, %s20
      %s24 = sphi 0, %s23
      %s40 = sphi 0, %s24
      %s46 = sphi 0, %s48
      %s49 = sphi 0, %s46
      %s50 = sphi 0, %s49
      %s66 = sphi 0, %s50
    $region4: #{tpu_custom_call.1} parent=1 // loop_header_branch
      %13 = sbr.rel (%p11) target = $region8
    $region5: #{tpu_custom_call.1} parent=1 // loop_body
      %s15 = ssub.s32 %s10, 1
      %s16 = ssub.s32 %s10, 2
      %s17 = sadd.s32 %s10, 1
      %s18 = ssub.s32 %s10, %s17
      %p19 = scmp.eq.s32.totalorder %s18, 0
      %s21 = sadd.s32 %s20, 1
      %s22 = scalar_select %p19, %s20, %s21
      %p25 = pneg %p19
      %p26 = scmp.eq.s32.totalorder %s10, 1
      %p27 = por %p25, %p26
      %p28 = scmp.ne.s32.totalorder %s20, %s23
      %p29 = scmp.eq.s32.totalorder %s10, 0
      %p30 = por %p28, %p29
      %p31 = scmp.ne.s32.totalorder %s20, %s23
      %p32 = scmp.eq.s32.totalorder %s15, 1
      %p33 = por %p31, %p32
      %p34 = scmp.ne.s32.totalorder %s23, %s24
      %p35 = scmp.eq.s32.totalorder %s15, 0
      %p36 = por %p34, %p35
      %p37 = scmp.ne.s32.totalorder %s23, %s24
      %p38 = scmp.eq.s32.totalorder %s16, 1
      %p39 = por %p37, %p38
      %p41 = scmp.ne.s32.totalorder %s24, %s40
      %p42 = scmp.eq.s32.totalorder %s16, 0
      %p43 = por %p41, %p42
      %s44 = ssub.s32 %s10, %s17
      %p45 = scmp.eq.s32.totalorder %s44, 0
      %s47 = sadd.s32 %s46, 1
      %s48 = scalar_select %p45, %s46, %s47
      %p51 = pneg %p45
      %p52 = scmp.eq.s32.totalorder %s10, 1
      %p53 = por %p51, %p52
      %p54 = scmp.ne.s32.totalorder %s46, %s49
      %p55 = scmp.eq.s32.totalorder %s10, 0
      %p56 = por %p54, %p55
      %p57 = scmp.ne.s32.totalorder %s46, %s49
      %p58 = scmp.eq.s32.totalorder %s15, 1
      %p59 = por %p57, %p58
      %p60 = scmp.ne.s32.totalorder %s49, %s50
      %p61 = scmp.eq.s32.totalorder %s15, 0
      %p62 = por %p60, %p61
      %p63 = scmp.ne.s32.totalorder %s49, %s50
      %p64 = scmp.eq.s32.totalorder %s16, 1
      %p65 = por %p63, %p64
      %p67 = scmp.ne.s32.totalorder %s50, %s66
      %p68 = scmp.eq.s32.totalorder %s16, 0
      %p69 = por %p67, %p68
      %p70 = scmp.le.s32.totalorder 1, %s10
      %p71 = scmp.lt.s32.totalorder %s10, 3
      %p72 = pnand %p70, %p71
      %p73 = pneg %p72
      // Predicated region
      $region9: #{tpu_custom_call.1} parent=5 // pred_check
        _
      $region10: #{tpu_custom_call.1} parent=5 // pred_check_branch
        %75 = sbr.rel (%p72) target = $region12
      $region11: #{tpu_custom_call.1} parent=5 // pred_region
        %s76 = ssub.s32 %s10, 1
      $region12: #{tpu_custom_call.1} parent=5 // pred_fallthru
        _
      %p77 = scmp.lt.s32.totalorder %s10, 2
      // Predicated region
      $region13: #{tpu_custom_call.1} parent=5 // pred_check
        %p78 = pneg %p77
      $region14: #{tpu_custom_call.1} parent=5 // pred_check_branch
        %80 = sbr.rel (%p78) target = $region16
      $region15: #{tpu_custom_call.1} parent=5 // pred_region
        // Predicated region
        $region17: #{tpu_custom_call.1} parent=15 // pred_check
          %p81 = pneg %p30
        $region18: #{tpu_custom_call.1} parent=15 // pred_check_branch
          %83 = sbr.rel (%p81) target = $region20
        $region19: #{tpu_custom_call.1} parent=15 // pred_region
          %s84 = sand.u32 %s20, 1
          %s85 = scalar_lea.sflag [#allocation4], %s84
          %s86 = sand.u32 %s20, 1
          %s87 = smul.addr %s86, 48
          %s88 = scalar_lea.vmem [#allocation3], %s87
          %90 = vsyncadd %s85, 0
          %s91 = smul.addr %s10, 6
          %s92 = smul.addr %s91, 8
          %s93 = scalar_lea.hbm %s0, %s92
          %s94 = sshll.u32 %s93, 4
          %s95 = int_to_ptr.hbm [resolvable:$true] %s94
          %s96 = sshll.u32 %s88, 4
          %s97 = int_to_ptr.vmem [resolvable:$true] %s96
          %102 = dma.hbm_to_vmem [thread:$0]  %s95, 768, %s97, %s85, 128, 128, 8
        $region20: #{tpu_custom_call.1} parent=15 // pred_fallthru
          _
      $region16: #{tpu_custom_call.1} parent=5 // pred_fallthru
        _
      %p103 = scmp.le.s32.totalorder 1, %s10
      %p104 = scmp.lt.s32.totalorder %s10, 3
      %p105 = pnand %p103, %p104
      %p106 = pneg %p105
      // Predicated region
      $region21: #{tpu_custom_call.1} parent=5 // pred_check
        _
      $region22: #{tpu_custom_call.1} parent=5 // pred_check_branch
        %108 = sbr.rel (%p105) target = $region24
      $region23: #{tpu_custom_call.1} parent=5 // pred_region
        %s109 = ssub.s32 %s10, 1
        %s110 = sand.u32 %s23, 1
        %s111 = scalar_lea.sflag [#allocation4], %s110
        %s112 = sand.u32 %s23, 1
        %s113 = smul.addr %s112, 48
        %s114 = scalar_lea.vmem [#allocation3], %s113
        // Predicated region
        $region25: #{tpu_custom_call.1} parent=23 // pred_check
          %p115 = pneg %p36
        $region26: #{tpu_custom_call.1} parent=23 // pred_check_branch
          %117 = sbr.rel (%p115) target = $region28
        $region27: #{tpu_custom_call.1} parent=23 // pred_region
          %119 = dma.done %s111, 768
        $region28: #{tpu_custom_call.1} parent=23 // pred_fallthru
          _
        %s120 = sand.u32 %s23, 1
        %s121 = scalar_lea.sflag [#allocation4], %s120
        %s122 = sand.u32 %s23, 1
        %s123 = smul.addr %s122, 48
        %s124 = scalar_lea.vmem [#allocation3], %s123
        %p125 = pneg %p36
        %p126 = pneg %p33
        %p127 = pneg %p62
        %p128 = pneg %p59
        %p129 = scmp.lt.s32.totalorder %s15, 1
        %s130 = scalar_select %p129, %s15, 1
        %s131 = smul.addr %s130, 9
        %s132 = smul.addr %s131, 8
        %s133 = scalar_lea.vmem %s1, %s132
        %p134 = scmp.lt.s32.totalorder %s15, 1
        %s135 = scalar_select %p134, %s15, 1
        %s136 = smul.addr %s135, 9
        %s137 = smul.addr %s136, 8
        %s138 = scalar_lea.vmem %s1, %s137
        %vm139 = vcmask 195584
        %140 = vst.msk [vmem:[#allocation2] sm:$0xff] %vm139, 0.0
        %141 = vst.msk [vmem:[#allocation2 + $0x8] sm:$0xff] %vm139, 0.0
        %142 = vst.msk [vmem:[#allocation2 + $0x10] sm:$0xff] %vm139, 0.0
        %143 = vst.msk [vmem:[#allocation2 + $0x18] sm:$0xff] %vm139, 0.0
        %144 = vst.msk [vmem:[#allocation2 + $0x20] sm:$0xff] %vm139, 0.0
        %145 = vst.msk [vmem:[#allocation2 + $0x28] sm:$0xff] %vm139, 0.0
        %146 = vst.msk [vmem:[#allocation2 + $0x30] sm:$0xff] %vm139, 0.0
        %147 = vst.msk [vmem:[#allocation2 + $0x38] sm:$0xff] %vm139, 0.0
        %148 = vst.msk [vmem:[#allocation2 + $0x40] sm:$0xff] %vm139, 0.0
        %v149 = vld [vmem:[%s114] sm:$0xff]
        %v150 = vld [vmem:[%s114 + $0x8] sm:$0xff]
        %v151 = vld [vmem:[%s114 + $0x10] sm:$0xff]
        %v152 = vld [vmem:[%s114 + $0x18] sm:$0xff]
        %v153 = vld [vmem:[%s114 + $0x20] sm:$0xff]
        %v154 = vld [vmem:[%s114 + $0x28] sm:$0xff]
        %161 = vrot.lane.b32.xlu0 %v149, 4
        %v162 = vpop.permute.xlu0 %161
        %163 = vrot.lane.b32.xlu0 %v150, 4
        %v164 = vpop.permute.xlu0 %163
        %165 = vrot.lane.b32.xlu0 %v151, 4
        %v166 = vpop.permute.xlu0 %165
        %167 = vrot.lane.b32.xlu0 %v152, 4
        %v168 = vpop.permute.xlu0 %167
        %169 = vrot.lane.b32.xlu0 %v153, 4
        %v170 = vpop.permute.xlu0 %169
        %171 = vrot.lane.b32.xlu0 %v154, 4
        %v172 = vpop.permute.xlu0 %171
        %vm179 = vcmask 162848
        %180 = vst.msk [vmem:[#allocation2 + $0x4] sm:$0xff] %vm179, %v162
        %181 = vst.msk [vmem:[#allocation2 + $0xc] sm:$0xff] %vm179, %v164
        %182 = vst.msk [vmem:[#allocation2 + $0x1c] sm:$0xff] %vm179, %v166
        %183 = vst.msk [vmem:[#allocation2 + $0x24] sm:$0xff] %vm179, %v168
        %184 = vst.msk [vmem:[#allocation2 + $0x34] sm:$0xff] %vm179, %v170
        %185 = vst.msk [vmem:[#allocation2 + $0x3c] sm:$0xff] %vm179, %v172
        %v186 = vld [vmem:[#allocation2] sm:$0xff]
        %v187 = vld [vmem:[#allocation2 + $0x8] sm:$0xff]
        %v188 = vld [vmem:[#allocation2 + $0x10] sm:$0xff]
        %v189 = vld [vmem:[#allocation2 + $0x18] sm:$0xff]
        %v190 = vld [vmem:[#allocation2 + $0x20] sm:$0xff]
        %v191 = vld [vmem:[#allocation2 + $0x28] sm:$0xff]
        %v192 = vld [vmem:[#allocation2 + $0x30] sm:$0xff]
        %v193 = vld [vmem:[#allocation2 + $0x38] sm:$0xff]
        %v194 = vld [vmem:[#allocation2 + $0x40] sm:$0xff]
        %v195 = vmul.f32 %v186, 0.026913157
        %v196 = vmul.f32 %v187, 0.026913157
        %v197 = vmul.f32 %v188, 0.026913157
        %v198 = vmul.f32 %v189, 0.026913157
        %v199 = vmul.f32 %v190, 0.026913157
        %v200 = vmul.f32 %v191, 0.026913157
        %v201 = vmul.f32 %v192, 0.026913157
        %v202 = vmul.f32 %v193, 0.026913157
        %v203 = vmul.f32 %v194, 0.026913157
        %v204 = vmul.f32 %v186, 0.23336768
        %v205 = vmul.f32 %v187, 0.23336768
        %v206 = vmul.f32 %v188, 0.23336768
        %v207 = vmul.f32 %v189, 0.23336768
        %v208 = vmul.f32 %v190, 0.23336768
        %v209 = vmul.f32 %v191, 0.23336768
        %v210 = vmul.f32 %v192, 0.23336768
        %v211 = vmul.f32 %v193, 0.23336768
        %v212 = vmul.f32 %v194, 0.23336768
        %vm222 = vcmask 1046528
        %v223 = vrot.slane %v204, 1
        %v224 = vrot.slane %v205, 1
        %v225 = vsel %vm222, %v223, %v224
        %v226 = vrot.slane %v206, 1
        %v227 = vsel %vm222, %v224, %v226
        %v228 = vrot.slane %v207, 1
        %v229 = vrot.slane %v208, 1
        %v230 = vsel %vm222, %v228, %v229
        %v231 = vrot.slane %v209, 1
        %v232 = vsel %vm222, %v229, %v231
        %v233 = vrot.slane %v210, 1
        %v234 = vrot.slane %v211, 1
        %v235 = vsel %vm222, %v233, %v234
        %v236 = vrot.slane %v212, 1
        %v237 = vsel %vm222, %v234, %v236
        %v247 = vadd.f32 %v195, %v225
        %v248 = vadd.f32 %v196, %v227
        %v249 = vadd.f32 %v197, %v226
        %v250 = vadd.f32 %v198, %v230
        %v251 = vadd.f32 %v199, %v232
        %v252 = vadd.f32 %v200, %v231
        %v253 = vadd.f32 %v201, %v235
        %v254 = vadd.f32 %v202, %v237
        %v255 = vadd.f32 %v203, %v236
        %v256 = vmul.f32 %v186, 0.4794383
        %v257 = vmul.f32 %v187, 0.4794383
        %v258 = vmul.f32 %v188, 0.4794383
        %v259 = vmul.f32 %v189, 0.4794383
        %v260 = vmul.f32 %v190, 0.4794383
        %v261 = vmul.f32 %v191, 0.4794383
        %v262 = vmul.f32 %v192, 0.4794383
        %v263 = vmul.f32 %v193, 0.4794383
        %v264 = vmul.f32 %v194, 0.4794383
        %vm274 = vcmask 1045504
        %v275 = vrot.slane %v256, 2
        %v276 = vrot.slane %v257, 2
        %v277 = vsel %vm274, %v275, %v276
        %v278 = vrot.slane %v258, 2
        %v279 = vsel %vm274, %v276, %v278
        %v280 = vrot.slane %v259, 2
        %v281 = vrot.slane %v260, 2
        %v282 = vsel %vm274, %v280, %v281
        %v283 = vrot.slane %v261, 2
        %v284 = vsel %vm274, %v281, %v283
        %v285 = vrot.slane %v262, 2
        %v286 = vrot.slane %v263, 2
        %v287 = vsel %vm274, %v285, %v286
        %v288 = vrot.slane %v264, 2
        %v289 = vsel %vm274, %v286, %v288
        %v299 = vadd.f32 %v247, %v277
        %v300 = vadd.f32 %v248, %v279
        %v301 = vadd.f32 %v249, %v278
        %v302 = vadd.f32 %v250, %v282
        %v303 = vadd.f32 %v251, %v284
        %v304 = vadd.f32 %v252, %v283
        %v305 = vadd.f32 %v253, %v287
        %v306 = vadd.f32 %v254, %v289
        %v307 = vadd.f32 %v255, %v288
        %vm308 = vcmask 1044480
        %v309 = vrot.slane %v204, 3
        %v310 = vrot.slane %v205, 3
        %v311 = vsel %vm308, %v309, %v310
        %v312 = vrot.slane %v206, 3
        %v313 = vsel %vm308, %v310, %v312
        %v314 = vrot.slane %v207, 3
        %v315 = vrot.slane %v208, 3
        %v316 = vsel %vm308, %v314, %v315
        %v317 = vrot.slane %v209, 3
        %v318 = vsel %vm308, %v315, %v317
        %v319 = vrot.slane %v210, 3
        %v320 = vrot.slane %v211, 3
        %v321 = vsel %vm308, %v319, %v320
        %v322 = vrot.slane %v212, 3
        %v323 = vsel %vm308, %v320, %v322
        %v333 = vadd.f32 %v299, %v311
        %v334 = vadd.f32 %v300, %v313
        %v335 = vadd.f32 %v301, %v312
        %v336 = vadd.f32 %v302, %v316
        %v337 = vadd.f32 %v303, %v318
        %v338 = vadd.f32 %v304, %v317
        %v339 = vadd.f32 %v305, %v321
        %v340 = vadd.f32 %v306, %v323
        %v341 = vadd.f32 %v307, %v322
        %vm351 = vcmask 1043456
        %v352 = vrot.slane %v195, 4
        %v353 = vrot.slane %v196, 4
        %v354 = vsel %vm351, %v352, %v353
        %v355 = vrot.slane %v197, 4
        %v356 = vsel %vm351, %v353, %v355
        %v357 = vrot.slane %v198, 4
        %v358 = vrot.slane %v199, 4
        %v359 = vsel %vm351, %v357, %v358
        %v360 = vrot.slane %v200, 4
        %v361 = vsel %vm351, %v358, %v360
        %v362 = vrot.slane %v201, 4
        %v363 = vrot.slane %v202, 4
        %v364 = vsel %vm351, %v362, %v363
        %v365 = vrot.slane %v203, 4
        %v366 = vsel %vm351, %v363, %v365
        %v376 = vadd.f32 %v333, %v354
        %v377 = vadd.f32 %v334, %v356
        %v378 = vadd.f32 %v335, %v355
        %v379 = vadd.f32 %v336, %v359
        %v380 = vadd.f32 %v337, %v361
        %v381 = vadd.f32 %v338, %v360
        %v382 = vadd.f32 %v339, %v364
        %v383 = vadd.f32 %v340, %v366
        %v384 = vadd.f32 %v341, %v365
        %v385 = vmul.f32 %v376, 0.026913157
        %v386 = vmul.f32 %v377, 0.026913157
        %v387 = vmul.f32 %v378, 0.026913157
        %v388 = vmul.f32 %v379, 0.026913157
        %v389 = vmul.f32 %v380, 0.026913157
        %v390 = vmul.f32 %v381, 0.026913157
        %v391 = vmul.f32 %v382, 0.026913157
        %v392 = vmul.f32 %v383, 0.026913157
        %v393 = vmul.f32 %v384, 0.026913157
        %v394 = vmul.f32 %v376, 0.23336768
        %v395 = vmul.f32 %v377, 0.23336768
        %v396 = vmul.f32 %v378, 0.23336768
        %v397 = vmul.f32 %v379, 0.23336768
        %v398 = vmul.f32 %v380, 0.23336768
        %v399 = vmul.f32 %v381, 0.23336768
        %v400 = vmul.f32 %v382, 0.23336768
        %v401 = vmul.f32 %v383, 0.23336768
        %v402 = vmul.f32 %v384, 0.23336768
        %412 = vrot.lane.b32.xlu0 %v394, 127
        %v413 = vpop.permute.xlu0 %412
        %414 = vrot.lane.b32.xlu0 %v395, 127
        %v415 = vpop.permute.xlu0 %414
        %416 = vrot.lane.b32.xlu0 %v396, 127
        %v417 = vpop.permute.xlu0 %416
        %418 = vrot.lane.b32.xlu0 %v397, 127
        %v419 = vpop.permute.xlu0 %418
        %420 = vrot.lane.b32.xlu0 %v398, 127
        %v421 = vpop.permute.xlu0 %420
        %422 = vrot.lane.b32.xlu0 %v399, 127
        %v423 = vpop.permute.xlu0 %422
        %424 = vrot.lane.b32.xlu0 %v400, 127
        %v425 = vpop.permute.xlu0 %424
        %426 = vrot.lane.b32.xlu0 %v401, 127
        %v427 = vpop.permute.xlu0 %426
        %428 = vrot.lane.b32.xlu0 %v402, 127
        %v429 = vpop.permute.xlu0 %428
        %v439 = vadd.f32 %v385, %v413
        %v440 = vadd.f32 %v386, %v415
        %v441 = vadd.f32 %v387, %v417
        %v442 = vadd.f32 %v388, %v419
        %v443 = vadd.f32 %v389, %v421
        %v444 = vadd.f32 %v390, %v423
        %v445 = vadd.f32 %v391, %v425
        %v446 = vadd.f32 %v392, %v427
        %v447 = vadd.f32 %v393, %v429
        %v448 = vmul.f32 %v376, 0.4794383
        %v449 = vmul.f32 %v377, 0.4794383
        %v450 = vmul.f32 %v378, 0.4794383
        %v451 = vmul.f32 %v379, 0.4794383
        %v452 = vmul.f32 %v380, 0.4794383
        %v453 = vmul.f32 %v381, 0.4794383
        %v454 = vmul.f32 %v382, 0.4794383
        %v455 = vmul.f32 %v383, 0.4794383
        %v456 = vmul.f32 %v384, 0.4794383
        %466 = vrot.lane.b32.xlu0 %v448, 126
        %v467 = vpop.permute.xlu0 %466
        %468 = vrot.lane.b32.xlu0 %v449, 126
        %v469 = vpop.permute.xlu0 %468
        %470 = vrot.lane.b32.xlu0 %v450, 126
        %v471 = vpop.permute.xlu0 %470
        %472 = vrot.lane.b32.xlu0 %v451, 126
        %v473 = vpop.permute.xlu0 %472
        %474 = vrot.lane.b32.xlu0 %v452, 126
        %v475 = vpop.permute.xlu0 %474
        %476 = vrot.lane.b32.xlu0 %v453, 126
        %v477 = vpop.permute.xlu0 %476
        %478 = vrot.lane.b32.xlu0 %v454, 126
        %v479 = vpop.permute.xlu0 %478
        %480 = vrot.lane.b32.xlu0 %v455, 126
        %v481 = vpop.permute.xlu0 %480
        %482 = vrot.lane.b32.xlu0 %v456, 126
        %v483 = vpop.permute.xlu0 %482
        %v493 = vadd.f32 %v439, %v467
        %v494 = vadd.f32 %v440, %v469
        %v495 = vadd.f32 %v441, %v471
        %v496 = vadd.f32 %v442, %v473
        %v497 = vadd.f32 %v443, %v475
        %v498 = vadd.f32 %v444, %v477
        %v499 = vadd.f32 %v445, %v479
        %v500 = vadd.f32 %v446, %v481
        %v501 = vadd.f32 %v447, %v483
        %502 = vrot.lane.b32.xlu0 %v394, 125
        %v503 = vpop.permute.xlu0 %502
        %504 = vrot.lane.b32.xlu0 %v395, 125
        %v505 = vpop.permute.xlu0 %504
        %506 = vrot.lane.b32.xlu0 %v396, 125
        %v507 = vpop.permute.xlu0 %506
        %508 = vrot.lane.b32.xlu0 %v397, 125
        %v509 = vpop.permute.xlu0 %508
        %510 = vrot.lane.b32.xlu0 %v398, 125
        %v511 = vpop.permute.xlu0 %510
        %512 = vrot.lane.b32.xlu0 %v399, 125
        %v513 = vpop.permute.xlu0 %512
        %514 = vrot.lane.b32.xlu0 %v400, 125
        %v515 = vpop.permute.xlu0 %514
        %516 = vrot.lane.b32.xlu0 %v401, 125
        %v517 = vpop.permute.xlu0 %516
        %518 = vrot.lane.b32.xlu0 %v402, 125
        %v519 = vpop.permute.xlu0 %518
        %v529 = vadd.f32 %v493, %v503
        %v530 = vadd.f32 %v494, %v505
        %v531 = vadd.f32 %v495, %v507
        %v532 = vadd.f32 %v496, %v509
        %v533 = vadd.f32 %v497, %v511
        %v534 = vadd.f32 %v498, %v513
        %v535 = vadd.f32 %v499, %v515
        %v536 = vadd.f32 %v500, %v517
        %v537 = vadd.f32 %v501, %v519
        %547 = vrot.lane.b32.xlu0 %v385, 124
        %v548 = vpop.permute.xlu0 %547
        %549 = vrot.lane.b32.xlu0 %v386, 124
        %v550 = vpop.permute.xlu0 %549
        %551 = vrot.lane.b32.xlu0 %v387, 124
        %v552 = vpop.permute.xlu0 %551
        %553 = vrot.lane.b32.xlu0 %v388, 124
        %v554 = vpop.permute.xlu0 %553
        %555 = vrot.lane.b32.xlu0 %v389, 124
        %v556 = vpop.permute.xlu0 %555
        %557 = vrot.lane.b32.xlu0 %v390, 124
        %v558 = vpop.permute.xlu0 %557
        %559 = vrot.lane.b32.xlu0 %v391, 124
        %v560 = vpop.permute.xlu0 %559
        %561 = vrot.lane.b32.xlu0 %v392, 124
        %v562 = vpop.permute.xlu0 %561
        %563 = vrot.lane.b32.xlu0 %v393, 124
        %v564 = vpop.permute.xlu0 %563
        %v574 = vadd.f32 %v529, %v548
        %v575 = vadd.f32 %v530, %v550
        %v576 = vadd.f32 %v531, %v552
        %v577 = vadd.f32 %v532, %v554
        %v578 = vadd.f32 %v533, %v556
        %v579 = vadd.f32 %v534, %v558
        %v580 = vadd.f32 %v535, %v560
        %v581 = vadd.f32 %v536, %v562
        %v582 = vadd.f32 %v537, %v564
        %vm583 = vcmask 162816
        %584 = vst.msk [vmem:[%s138] sm:$0xff] %vm583, %v574
        %585 = vst.msk [vmem:[%s138 + $0x8] sm:$0xff] %vm583, %v575
        %vm586 = vcmask 158720
        %587 = vst.msk [vmem:[%s138 + $0x10] sm:$0xf] %vm586, %v576
        %588 = vst.msk [vmem:[%s138 + $0x18] sm:$0xff] %vm583, %v577
        %589 = vst.msk [vmem:[%s138 + $0x20] sm:$0xff] %vm583, %v578
        %590 = vst.msk [vmem:[%s138 + $0x28] sm:$0xf] %vm586, %v579
        %591 = vst.msk [vmem:[%s138 + $0x30] sm:$0xff] %vm583, %v580
        %592 = vst.msk [vmem:[%s138 + $0x38] sm:$0xff] %vm583, %v581
        %593 = vst.msk [vmem:[%s138 + $0x40] sm:$0xf] %vm586, %v582
        %p594 = scmp.lt.s32.totalorder %s15, 1
        %s595 = scalar_select %p594, %s15, 1
        %s596 = smul.addr %s595, 9
        %s597 = smul.addr %s596, 8
        %s598 = scalar_lea.vmem %s1, %s597
        // Predicated region
        $region29: #{tpu_custom_call.1} parent=23 // pred_check
          %p599 = pneg %p59
        $region30: #{tpu_custom_call.1} parent=23 // pred_check_branch
          %601 = sbr.rel (%p599) target = $region32
        $region31: #{tpu_custom_call.1} parent=23 // pred_region
          _
        $region32: #{tpu_custom_call.1} parent=23 // pred_fallthru
          _
      $region24: #{tpu_custom_call.1} parent=5 // pred_fallthru
        _
      %p602 = scmp.le.s32.totalorder 2, %s10
      // Predicated region
      $region33: #{tpu_custom_call.1} parent=5 // pred_check
        %p603 = pneg %p602
      $region34: #{tpu_custom_call.1} parent=5 // pred_check_branch
        %605 = sbr.rel (%p603) target = $region36
      $region35: #{tpu_custom_call.1} parent=5 // pred_region
        %s606 = ssub.s32 %s10, 2
        // Predicated region
        $region37: #{tpu_custom_call.1} parent=35 // pred_check
          %p607 = pneg %p65
        $region38: #{tpu_custom_call.1} parent=35 // pred_check_branch
          %609 = sbr.rel (%p607) target = $region40
        $region39: #{tpu_custom_call.1} parent=35 // pred_region
          %p610 = scmp.lt.s32.totalorder %s16, 1
          %s611 = scalar_select %p610, %s16, 1
          %s612 = smul.addr %s611, 9
          %s613 = smul.addr %s612, 8
          %s614 = scalar_lea.vmem %s1, %s613
        $region40: #{tpu_custom_call.1} parent=35 // pred_fallthru
          _
      $region36: #{tpu_custom_call.1} parent=5 // pred_fallthru
        _
    $region6: #{tpu_custom_call.1} parent=1 // loop_footer
      %s14 = sadd.s32 1, %s10
    $region7: #{tpu_custom_call.1} parent=1 // loop_footer_branch
      %9 = sbr.rel target = $region3
    $region8: #{tpu_custom_call.1} parent=1 // loop_exit
      _
    %615 = vsyncpa [#allocation4], 1
    %s616 = scalar_lea.sflag [#allocation4], 1
    %617 = vsyncpa %s616, 1

</llo_original>
